<compile_context>
chip_gen: v6e
topology: v6e:2x2x1
jax: 0.10.0
libtpu: 0.0.40
codegen_flags: <defaults>
</compile_context>

<pallas_src>
import functools
import math

import jax
import jax.numpy as jnp
from jax import lax
from jax.experimental import pallas as pl
from jax.experimental.pallas import tpu as pltpu


_LANES = 128
_MAX_TILE_ROWS = 2048  # 2048 * 128 * 4B = 1 MiB per f32 tile (~4 MiB double-buffered)


def _round_up(x, m):
    return ((x + m - 1) // m) * m


# ---------------------------------------------------------------------------
# Pass 1: global signal-power reduction (per-lane partial sums of x^2).
# ---------------------------------------------------------------------------
def _power_kernel(x_ref, acc_ref, *, tile_rows, n_rows):
    i = pl.program_id(0)

    @pl.when(i == 0)
    def _init():
        acc_ref[...] = jnp.zeros_like(acc_ref)

    x = x_ref[...].astype(jnp.float32)
    # Mask rows past the real extent (the last tile may be partial).
    row = lax.broadcasted_iota(jnp.int32, x.shape, 0) + i * tile_rows
    xm = jnp.where(row < n_rows, x, 0.0)
    acc_ref[...] += jnp.sum(xm * xm, axis=0, keepdims=True)


# ---------------------------------------------------------------------------
# Pass 2 helpers: counter-hash PRNG + inverse-CDF standard normal.
# ---------------------------------------------------------------------------
def _hash_u32(h):
    """32-bit avalanche hash (splitmix32-style finalizer). Pure VPU int ops."""
    h = h ^ (h >> 16)
    h = h * jnp.uint32(0x7FEB352D)
    h = h ^ (h >> 15)
    h = h * jnp.uint32(0x846CA68B)
    h = h ^ (h >> 16)
    return h


def _std_normal_from_u24(v):
    """v: float32 in [0, 2**24).  Returns ~N(0,1) via z = sqrt(2)*erfinv(2u-1).

    erfinv uses Giles' single-precision polynomial approximation, so the only
    transcendentals are one log and one sqrt per element.
    """
    t = (v + 0.5) * jnp.float32(2.0 ** -23) - 1.0          # uniform in (-1, 1)
    w = -jnp.log((1.0 - t) * (1.0 + t))

    # Central branch (w < 5).
    wc = w - 2.5
    pc = jnp.float32(2.81022636e-08)
    pc = jnp.float32(3.43273939e-07) + pc * wc
    pc = jnp.float32(-3.5233877e-06) + pc * wc
    pc = jnp.float32(-4.39150654e-06) + pc * wc
    pc = jnp.float32(0.00021858087) + pc * wc
    pc = jnp.float32(-0.00125372503) + pc * wc
    pc = jnp.float32(-0.00417768164) + pc * wc
    pc = jnp.float32(0.246640727) + pc * wc
    pc = jnp.float32(1.50140941) + pc * wc

    # Tail branch (w >= 5).
    wt = jnp.sqrt(w) - 3.0
    pt = jnp.float32(-0.000200214257)
    pt = jnp.float32(0.000100950558) + pt * wt
    pt = jnp.float32(0.00134934322) + pt * wt
    pt = jnp.float32(-0.00367342844) + pt * wt
    pt = jnp.float32(0.00573950773) + pt * wt
    pt = jnp.float32(-0.0076224613) + pt * wt
    pt = jnp.float32(0.00943887047) + pt * wt
    pt = jnp.float32(1.00167406) + pt * wt
    pt = jnp.float32(2.83297682) + pt * wt

    erfinv = jnp.where(w < 5.0, pc, pt) * t
    return jnp.float32(math.sqrt(2.0)) * erfinv


def _awgn_add_kernel(std_ref, seed_ref, x_ref, o_ref, *, tile_rows):
    """out = x + N(0,1) * noise_std, streaming one (tile_rows, 128) block."""
    i = pl.program_id(0)
    x = x_ref[...].astype(jnp.float32)

    # Unique 32-bit counter per element across the whole array -> random bits.
    row = lax.broadcasted_iota(jnp.int32, x.shape, 0)
    lane = lax.broadcasted_iota(jnp.int32, x.shape, 1)
    counter = (i * tile_rows + row) * _LANES + lane
    seed = seed_ref[0].astype(jnp.uint32) * jnp.uint32(0x9E3779B9)
    bits = _hash_u32(counter.astype(jnp.uint32) + seed)

    v = (bits >> 8).astype(jnp.int32).astype(jnp.float32)   # top 24 bits
    z = _std_normal_from_u24(v)

    o_ref[...] = (x + z * std_ref[0]).astype(o_ref.dtype)


# ---------------------------------------------------------------------------
# Wrapper
# ---------------------------------------------------------------------------
def awgn_channel(input_signal, snr_db, *, seed=0):
    """Pallas AWGN channel matching the PyTorch module's forward pass."""
    orig_shape = input_signal.shape
    dtype = input_signal.dtype
    n_elems = input_signal.size
    if n_elems == 0:
        return input_signal

    flat = input_signal.reshape(-1)
    pad = (-n_elems) % _LANES
    if pad:
        flat = jnp.concatenate([flat, jnp.zeros((pad,), dtype=dtype)])
    rows = flat.size // _LANES
    x2 = flat.reshape(rows, _LANES)

    tile_rows = min(_MAX_TILE_ROWS, _round_up(rows, 16))
    grid = (pl.cdiv(rows, tile_rows),)

    # ---- Pass 1: per-lane partial sums of x^2 (global power reduction). ----
    lane_sums = pl.pallas_call(
        functools.partial(_power_kernel, tile_rows=tile_rows, n_rows=rows),
        out_shape=jax.ShapeDtypeStruct((1, _LANES), jnp.float32),
        grid=grid,
        in_specs=[pl.BlockSpec((tile_rows, _LANES), lambda i: (i, 0))],
        out_specs=pl.BlockSpec((1, _LANES), lambda i: (0, 0)),
        compiler_params=pltpu.CompilerParams(
            dimension_semantics=("arbitrary",),
            vmem_limit_bytes=32 * 1024 * 1024,
        ),
    )(x2)

    # Scalar SNR math stays outside the per-tile hot path.
    signal_power = jnp.sum(lane_sums) / jnp.float32(n_elems)
    snr_db_f = jnp.asarray(snr_db, dtype=jnp.float32)
    snr_linear = jnp.float32(10.0) ** (snr_db_f / jnp.float32(10.0))
    noise_std = jnp.sqrt(signal_power / snr_linear)

    std_arr = jnp.reshape(noise_std, (1,)).astype(jnp.float32)
    seed_arr = jnp.asarray([seed], dtype=jnp.int32)

    # ---- Pass 2: streaming elementwise noise-add kernel. ----
    out2 = pl.pallas_call(
        functools.partial(_awgn_add_kernel, tile_rows=tile_rows),
        out_shape=jax.ShapeDtypeStruct((rows, _LANES), dtype),
        grid=grid,
        in_specs=[
            pl.BlockSpec(memory_space=pltpu.MemorySpace.SMEM),    # noise_std
            pl.BlockSpec(memory_space=pltpu.MemorySpace.SMEM),    # seed
            pl.BlockSpec((tile_rows, _LANES), lambda i: (i, 0)),  # x tile
        ],
        out_specs=pl.BlockSpec((tile_rows, _LANES), lambda i: (i, 0)),
        compiler_params=pltpu.CompilerParams(
            dimension_semantics=("parallel",),
            vmem_limit_bytes=32 * 1024 * 1024,
        ),
    )(std_arr, seed_arr, x2)

    out_flat = out2.reshape(-1)
    if pad:
        out_flat = out_flat[:n_elems]
    return out_flat.reshape(orig_shape)


if __name__ == "__main__":
    key = jax.random.PRNGKey(0)
    # NCHW input: batch=2, channels=4, spatial=16x16.
    x = jax.random.normal(key, (2, 4, 16, 16), dtype=jnp.float32)
    snr_db = 10.0

    y = awgn_channel(x, snr_db, seed=0)
    y = jax.block_until_ready(y)

    # Sanity checks: shape/dtype preserved; noise power roughly matches SNR.
    assert y.shape == x.shape and y.dtype == x.dtype
    noise = y - x
    sig_p = float(jnp.mean(x * x))
    noise_p = float(jnp.mean(noise * noise))
    expected_noise_p = sig_p / (10.0 ** (snr_db / 10.0))
    assert 0.5 * expected_noise_p < noise_p < 2.0 * expected_noise_p, (
        noise_p, expected_noise_p)

    print("KERNEL_OK")
</pallas_src>

<mosaic_0001>
module attributes {stable_mosaic.version = 11 : i64} {
  func.func @_power_kernel(%arg0: i32, %arg1: memref<16x128xf32, #tpu.memory_space<vmem>>, %arg2: memref<1x128xf32, #tpu.memory_space<vmem>>) attributes {dimension_semantics = [#tpu.dimension_semantics<arbitrary>], iteration_bounds = array<i64: 1>, scalar_prefetch = 0 : i64, scratch_operands = 0 : i64, tpu.core_type = #tpu.core_type<tc>, window_params = [{transform_indices = @transform_0, window_bounds = array<i64: 16, 128>}, {pipeline_mode = #tpu.pipeline_mode<synchronous>, transform_indices = @transform_1, window_bounds = array<i64: 1, 128>}]} {
    %c0_i32 = arith.constant 0 : i32
    %0 = arith.cmpi eq, %arg0, %c0_i32 : i32
    %1 = arith.extui %0 : i1 to i32
    %c0_i32_0 = arith.constant 0 : i32
    %2 = arith.cmpi ne, %1, %c0_i32_0 : i32
    scf.if %2 {
      %cst_8 = arith.constant 0.000000e+00 : f32
      %18 = vector.broadcast %cst_8 : f32 to vector<1x128xf32>
      %c0_9 = arith.constant 0 : index
      %c0_10 = arith.constant 0 : index
      %19 = vector.load %arg2[%c0_9, %c0_10] : memref<1x128xf32, #tpu.memory_space<vmem>>, vector<1x128xf32>
      tpu.vector_store %arg2[%c0_9, %c0_10], %18 {strides = array<i32>} : memref<1x128xf32, #tpu.memory_space<vmem>>, vector<1x128xf32>,
    } else {
    }
    %c0 = arith.constant 0 : index
    %c0_1 = arith.constant 0 : index
    %3 = vector.load %arg1[%c0, %c0_1] : memref<16x128xf32, #tpu.memory_space<vmem>>, vector<16x128xf32>
    %4 = tpu.iota {dimensions = array<i32: 0>} : vector<16x128xi32>
    %c16_i32 = arith.constant 16 : i32
    %5 = arith.muli %arg0, %c16_i32 : i32
    %6 = vector.broadcast %5 : i32 to vector<16x128xi32>
    %7 = arith.addi %4, %6 : vector<16x128xi32>
    %c16_i32_2 = arith.constant 16 : i32
    %8 = vector.broadcast %c16_i32_2 : i32 to vector<16x128xi32>
    %9 = arith.cmpi slt, %7, %8 : vector<16x128xi32>
    %cst = arith.constant 0.000000e+00 : f32
    %10 = vector.broadcast %cst : f32 to vector<16x128xf32>
    %11 = arith.select %9, %3, %10 : vector<16x128xi1>, vector<16x128xf32>
    %c0_3 = arith.constant 0 : index
    %c0_4 = arith.constant 0 : index
    %12 = vector.load %arg2[%c0_3, %c0_4] : memref<1x128xf32, #tpu.memory_space<vmem>>, vector<1x128xf32>
    %13 = arith.mulf %11, %11 : vector<16x128xf32>
    %cst_5 = arith.constant dense<0.000000e+00> : vector<128xf32>
    %14 = vector.multi_reduction <add>, %13, %cst_5 [0] : vector<16x128xf32> to vector<128xf32>
    %15 = vector.shape_cast %14 : vector<128xf32> to vector<1x128xf32>
    %16 = arith.addf %12, %15 : vector<1x128xf32>
    %c0_6 = arith.constant 0 : index
    %c0_7 = arith.constant 0 : index
    %17 = vector.load %arg2[%c0_6, %c0_7] : memref<1x128xf32, #tpu.memory_space<vmem>>, vector<1x128xf32>
    tpu.vector_store %arg2[%c0_6, %c0_7], %16 {strides = array<i32>} : memref<1x128xf32, #tpu.memory_space<vmem>>, vector<1x128xf32>,
    return
  }
  func.func @transform_0(%arg0: i32) -> (i32, i32) {
    %c0_i32 = arith.constant 0 : i32
    %c0_i32_0 = arith.constant 0 : i32
    return %arg0, %c0_i32 : i32, i32
  }
  func.func @transform_1(%arg0: i32) -> (i32, i32) {
    %c0_i32 = arith.constant 0 : i32
    %c0_i32_0 = arith.constant 0 : i32
    %c0_i32_1 = arith.constant 0 : i32
    return %c0_i32, %c0_i32_0 : i32, i32
  }
}

</mosaic_0001>

<llo_original>
// kernel: tpu_custom_call.1
$region0: #{tpu_custom_call.1}
  #allocation0 [shape = 'u32[]', space=smem, size = 0x4, offset = 0x4, fixed_abs, tag = 'smem constant byte address 0x4 - core index']
  #allocation1 [shape = 'u32[144,128]{1,0:T(1,128)}', space=vmem, size = 0x12000, scoped, tag = 'internal scratch']
  %s0 = inlined_call_operand.hbm [shape: f32[16,128], index: 0, kind: input, shape index: {}]
  %s1 = inlined_call_operand.hbm [shape: f32[1,128], index: 1, kind: output, shape index: {}]
  %s2 = sld [smem:[#allocation0]]
  $region22: #{tpu_custom_call.1} parent=0
    _
  %s4 = ssub.s32 1, %s2
  %s5 = scalar_select 0, %s4, %s2
  $region1: #{tpu_custom_call.1} parent=0
    #allocation2 [shape = 'u8[8192]{0}', space=vmem, size = 0x2000, scoped, tag = 'input window, operand 0, single buffered']
    #allocation3 [shape = 's32[1]{0}', space=sflag, size = 0x4, scoped, tag = 'scoped memory for tpu_custom_call.1']
    #allocation4 [shape = 's32[1]{0}', space=sflag, size = 0x4, scoped, tag = 'scoped memory for tpu_custom_call.1']
    #allocation5 [shape = 'u8[512]{0}', space=vmem, size = 0x400, scoped, tag = 'output window, operand 0, single buffered']
    %6 = vsyncpa [#allocation3], 0
    %7 = vsyncpa [#allocation4], 0
    // Predicated region
    $region2: #{tpu_custom_call.1} parent=1 // pred_check
      _
    $region3: #{tpu_custom_call.1} parent=1 // pred_check_branch
      %9 = sbr.rel (0) target = $region5
    $region4: #{tpu_custom_call.1} parent=1 // pred_region
      %s11 = ssub.s32 256, 256
      %12 = vsyncadd [#allocation3], %s11
      %s13 = sshll.u32 [#allocation2], 4
      %s14 = int_to_ptr.vmem [resolvable:$true] %s13
      %19 = dma.hbm_to_vmem [thread:$0]  %s0, 256, %s14, [#allocation3], 128, 128, 8
    $region5: #{tpu_custom_call.1} parent=1 // pred_fallthru
      _
    // Predicated region
    $region6: #{tpu_custom_call.1} parent=1 // pred_check
      _
    $region7: #{tpu_custom_call.1} parent=1 // pred_check_branch
      %21 = sbr.rel (0) target = $region9
    $region8: #{tpu_custom_call.1} parent=1 // pred_region
      %22 = dma.done [#allocation3], 256
    $region9: #{tpu_custom_call.1} parent=1 // pred_fallthru
      _
    %p23 = scmp.eq.s32.totalorder 0, 0
    // Predicated region
    $region10: #{tpu_custom_call.1} parent=1 // pred_check
      %p24 = pneg %p23
    $region11: #{tpu_custom_call.1} parent=1 // pred_check_branch
      %26 = sbr.rel (%p24) target = $region13
    $region12: #{tpu_custom_call.1} parent=1 // pred_region
      %27 = vst [vmem:[#allocation5] sm:$0x1] 0.0
    $region13: #{tpu_custom_call.1} parent=1 // pred_fallthru
      _
    %v28 = vld [vmem:[#allocation2] sm:$0xff]
    %v29 = vld [vmem:[#allocation2 + $0x8] sm:$0xff]
    %v30 = vlaneseq
    %v31 = vshrl.u32 %v30, 7
    %v32 = vadd.s32 %v31, 8
    %s33 = smul.u32 0, 16
    %v34 = vstv %s33
    %v35 = vadd.s32 %v31, %v34
    %v36 = vadd.s32 %v32, %v34
    %vm37 = vcmp.lt.s32.totalorder %v35, 16
    %vm38 = vcmp.lt.s32.totalorder %v36, 16
    %v39 = vsel %vm37, %v28, 0.0
    %v40 = vsel %vm38, %v29, 0.0
    %v41 = vld [vmem:[#allocation5] sm:$0x1]
    %v42 = vmul.f32 %v39, %v39
    %v43 = vmul.f32 %v40, %v40
    %v44 = vadd.f32 %v42, %v43
    %v45 = vrot.slane %v44, 4
    %v46 = vadd.f32 %v44, %v45
    %v47 = vrot.slane %v46, 2
    %v48 = vadd.f32 %v46, %v47
    %v49 = vrot.slane %v48, 1
    %v50 = vadd.f32 %v48, %v49
    %v51 = vadd.f32 %v41, %v50
    %52 = vst [vmem:[#allocation5] sm:$0x1] %v51
    // Predicated region
    $region14: #{tpu_custom_call.1} parent=1 // pred_check
      _
    $region15: #{tpu_custom_call.1} parent=1 // pred_check_branch
      %54 = sbr.rel (0) target = $region17
    $region16: #{tpu_custom_call.1} parent=1 // pred_region
      %s56 = ssub.s32 16, 16
      %57 = vsyncadd [#allocation4], %s56
      %s59 = sshll.u32 [#allocation5], 4
      %s60 = int_to_ptr.vmem [resolvable:$true] %s59
      %62 = dma.vmem_to_hbm [thread:$0]  %s60, 16, %s1, [#allocation4]
    $region17: #{tpu_custom_call.1} parent=1 // pred_fallthru
      _
    // Predicated region
    $region18: #{tpu_custom_call.1} parent=1 // pred_check
      _
    $region19: #{tpu_custom_call.1} parent=1 // pred_check_branch
      %64 = sbr.rel (0) target = $region21
    $region20: #{tpu_custom_call.1} parent=1 // pred_region
      %65 = dma.done [#allocation4], 16
    $region21: #{tpu_custom_call.1} parent=1 // pred_fallthru
      _
    %66 = vsyncpa [#allocation3], 1
    %67 = vsyncpa [#allocation4], 1

</llo_original>
